<compile_context>
chip_gen: v7x
topology: tpu7x:2x2x1
jax: 0.10.0
libtpu: 0.0.40
codegen_flags: <defaults>
</compile_context>

<pallas_src>
import functools
import math

import jax
import jax.numpy as jnp
from jax.experimental import pallas as pl
from jax.experimental.pallas import tpu as pltpu


def _round_up(a, m):
    return ((a + m - 1) // m) * m


# ----------------------------------------------------------------------------
# Pallas kernel
# ----------------------------------------------------------------------------

def _causal_deconv_kernel(x_ref, w_ref, u_ref, o_ref, ext_ref, col_ref, *,
                          S, Cin, Cout, T, P, Mmax, Crow, brow, Jc, Jb,
                          Zlead, Text, Bt):
    """One batch-tile per grid step.

    x_ref  : (Bt, Cin, T)            raw (unpadded) input
    w_ref  : (S*Cout, Krows)         polyphase weight + bias column (compute dtype)
    u_ref  : (S*Jb, S*Jb)            0/1 interleave permutation, f32
    o_ref  : (Bt, Cout, S*Jc)        time-major output (lane-aligned chunks)
    ext_ref: (Bt, Cin, Text)         f32: [0]*Zlead | x0*P | x | 0...   (x lane-aligned)
    col_ref: (Krows, Bt*Jc)          im2col RHS in compute dtype
    """
    f32 = jnp.float32
    cdt = col_ref.dtype
    xoff = Zlead + P                                   # multiple of 128

    # ---- build replication-padded, zero-extended input rows in VMEM ------------
    for bb in range(Bt):
        xb = x_ref[bb].astype(f32)                     # (Cin, T)
        if Zlead > 0:                                  # small, bounded (<128 lanes)
            ext_ref[bb, :, 0:Zlead] = jnp.zeros((Cin, Zlead), f32)
        if P > 0:                                      # causal replicate pad (P lanes)
            ext_ref[bb, :, Zlead:Zlead + P] = jnp.broadcast_to(xb[:, 0:1], (Cin, P))
        ext_ref[bb, :, xoff:xoff + T] = xb             # lane-aligned main copy
        ext_ref[bb, :, xoff + T:Text] = jnp.zeros((Cin, Text - xoff - T), f32)

    # ---- im2col: row block m = x_pad shifted by (1 - m) lanes -------------------
    for m in range(Mmax):
        start = Zlead + 1 - m
        for bb in range(Bt):
            blk = ext_ref[bb, :, start:start + Jc]     # (Cin, Jc) f32
            if Crow > Cin:                             # pad rows -> full sublane tiles
                blk = jnp.concatenate(
                    [blk, jnp.zeros((Crow - Cin, Jc), f32)], axis=0)
            col_ref[m * Crow:(m + 1) * Crow, bb * Jc:(bb + 1) * Jc] = blk.astype(cdt)

    # ---- bias row (ones) folded into the contraction ----------------------------
    ones_blk = (jax.lax.broadcasted_iota(jnp.int32, (brow, Bt * Jc), 0) == 0)
    col_ref[Mmax * Crow:Mmax * Crow + brow, :] = ones_blk.astype(cdt)

    # ---- main polyphase matmul on the MXU (f32 accumulation) --------------------
    y = jnp.dot(w_ref[...], col_ref[...], preferred_element_type=jnp.float32)
    # y[r*Cout+co, bb*Jc + j] = out_full[bb, co, (j+1)*S + r]

    # ---- fused phase -> time interleave (MXU 0/1 permutation, per 128-col chunk) -
    if S == 1:
        for bb in range(Bt):
            o_ref[bb] = y[:, bb * Jc:(bb + 1) * Jc].astype(o_ref.dtype)
    else:
        Tb = S * Jb
        for bb in range(Bt):
            for c in range(Jc // Jb):
                base = bb * Jc + c * Jb
                acc = None
                for r in range(S):
                    part = jnp.dot(
                        y[r * Cout:(r + 1) * Cout, base:base + Jb],
                        u_ref[r * Jb:(r + 1) * Jb, :],
                        preferred_element_type=jnp.float32)
                    acc = part if acc is None else acc + part
                o_ref[bb, :, c * Tb:(c + 1) * Tb] = acc.astype(o_ref.dtype)


# ----------------------------------------------------------------------------
# Wrapper
# ----------------------------------------------------------------------------

def causal_conv_transpose1d(x, w, b=None, *, stride,
                            compute_dtype=jnp.float32, out_dtype=None,
                            batch_tile=None, lane_chunk=128):
    """CausalConvTranspose1d.forward.

    x : (B, Cin, T)  float32 or bfloat16
    w : (Cin, Cout, K)  (PyTorch nn.ConvTranspose1d weight layout)
    b : (Cout,) or None
    Returns (B, Cout, Tout), Tout = (T + P - 1)*stride + K - 2*stride.
    compute_dtype : MXU operand dtype (f32 accumulation always); bf16 halves traffic
                    on v6e/v7x.  out_dtype defaults to x.dtype (bf16 I/O supported).
    """
    B, Cin, T = x.shape
    Cin_w, Cout, K = w.shape
    assert Cin_w == Cin and stride >= 1 and K >= 1
    S = stride
    Mmax = -(-K // S)                 # ceil(K/S) = taps per output phase
    P = Mmax - 1                      # == module pad_length
    assert P < 128, "pad_length >= 128 not supported"
    Tin = T + P
    Tout = (Tin - 1) * S + K - 2 * S
    assert Tout > 0, "output of deconv must be longer than 2*stride"

    out_dtype = x.dtype if out_dtype is None else out_dtype

    # lane geometry: j (polyphase time) chunked by Jb, 128-aligned everywhere
    Jb = lane_chunk
    assert Jb % 128 == 0
    Jc = _round_up(max(T + 2 * P, Jb), Jb)
    Zlead = (-P) % 128                       # leading zeros so x lands lane-aligned
    Text = Zlead + P + Jc + (128 if P == 0 else 0)

    # im2col row-block geometry padded to the sublane packing of compute_dtype
    packing = 2 if jnp.dtype(compute_dtype) == jnp.dtype(jnp.bfloat16) else 1
    sub = 8 * packing
    Crow = _round_up(Cin, sub)
    brow = sub                               # bias (ones) block
    Krows = Mmax * Crow + brow

    # batch tile: fold several batch elements into the matmul lane dim
    if batch_tile is None:
        batch_tile = max(1, min(B, 2048 // Jc))
        while B % batch_tile:
            batch_tile -= 1
    Bt = batch_tile
    assert B % Bt == 0
    nbt = B // Bt

    # polyphase weight matrix (+ folded bias column); zero where m*S+r >= K / ci pad
    w32 = w.astype(jnp.float32)
    w_big = jnp.zeros((S * Cout, Krows), jnp.float32)
    for r in range(S):
        for m in range(Mmax):
            k = m * S + r
            if k < K:
                w_big = w_big.at[r * Cout:(r + 1) * Cout,
                                 m * Crow:m * Crow + Cin].set(w32[:, :, k].T)
    if b is not None:
        w_big = w_big.at[:, Mmax * Crow].set(jnp.tile(b.astype(jnp.float32), S))
    w_big = w_big.astype(compute_dtype)

    # interleave permutation:  U[r*Jb + j, j*S + r] = 1   (constant, loaded once)
    pidx = jnp.arange(S * Jb)
    tgt = (pidx % Jb) * S + (pidx // Jb)
    u_mat = (jnp.arange(S * Jb)[None, :] == tgt[:, None]).astype(jnp.float32)

    kern = functools.partial(
        _causal_deconv_kernel, S=S, Cin=Cin, Cout=Cout, T=T, P=P, Mmax=Mmax,
        Crow=Crow, brow=brow, Jc=Jc, Jb=Jb, Zlead=Zlead, Text=Text, Bt=Bt)

    xsize = jnp.dtype(x.dtype).itemsize
    csize = jnp.dtype(compute_dtype).itemsize
    osize = jnp.dtype(out_dtype).itemsize
    flops = (2 * B * (S * Cout) * Krows * Jc              # main polyphase matmul
             + 2 * B * Cout * S * S * Jb * Jc)            # interleave matmuls
    bytes_accessed = (B * Cin * T * xsize + S * Cout * Krows * csize
                      + (S * Jb) ** 2 * 4 + B * Cout * S * Jc * osize)
    vmem_est = (2 * Bt * Cin * T * xsize + 2 * S * Cout * Krows * csize
                + 2 * (S * Jb) ** 2 * 4 + 2 * Bt * Cout * S * Jc * osize
                + Bt * Cin * Text * 4 + Krows * Bt * Jc * csize)
    vmem_limit = int(min(100 * 2 ** 20, max(32 * 2 ** 20, 2 * vmem_est)))

    y = pl.pallas_call(
        kern,
        out_shape=jax.ShapeDtypeStruct((B, Cout, S * Jc), out_dtype),
        grid=(nbt,),
        in_specs=[
            pl.BlockSpec((Bt, Cin, T), lambda i: (i, 0, 0)),
            pl.BlockSpec((S * Cout, Krows), lambda i: (0, 0)),
            pl.BlockSpec((S * Jb, S * Jb), lambda i: (0, 0)),
        ],
        out_specs=pl.BlockSpec((Bt, Cout, S * Jc), lambda i: (i, 0, 0)),
        scratch_shapes=[
            pltpu.VMEM((Bt, Cin, Text), jnp.float32),      # padded/extended input
            pltpu.VMEM((Krows, Bt * Jc), compute_dtype),   # im2col RHS
        ],
        compiler_params=pltpu.CompilerParams(
            dimension_semantics=("parallel",),
            vmem_limit_bytes=vmem_limit),
        cost_estimate=pl.CostEstimate(
            flops=int(flops), transcendentals=0,
            bytes_accessed=int(bytes_accessed)),
    )(x, w_big, u_mat)

    # kernel output is already time-major and shifted by S -> pure prefix crop
    return y[:, :, :Tout]


# ----------------------------------------------------------------------------
# Pure-JAX reference (mirrors the PyTorch module definition exactly)
# ----------------------------------------------------------------------------

def _conv_transpose1d_ref(x, w, b, *, stride):
    """nn.ConvTranspose1d(padding=0, output_padding=0, dilation=1, groups=1)."""
    B, Cin, Tin = x.shape
    _, Cout, K = w.shape
    Tfull = (Tin - 1) * stride + K
    contrib = jnp.einsum("bci,cok->boik", x, w,
                         precision=jax.lax.Precision.HIGHEST)   # (B,Cout,Tin,K)
    y = jnp.zeros((B, Cout, Tfull), jnp.float32)
    for k in range(K):
        y = y.at[:, :, k:k + (Tin - 1) * stride + 1:stride].add(contrib[..., k])
    if b is not None:
        y = y + b[None, :, None]
    return y


def causal_conv_transpose1d_ref(x, w, b, *, stride):
    K = w.shape[2]
    P = math.ceil(K / stride) - 1
    if P > 0:  # ReplicationPad1d((P, 0))
        x = jnp.concatenate([jnp.repeat(x[:, :, :1], P, axis=-1), x], axis=-1)
    y = _conv_transpose1d_ref(x, w, b, stride=stride)
    return y[:, :, stride:-stride]


# ----------------------------------------------------------------------------

if __name__ == "__main__":
    key = jax.random.PRNGKey(0)

    # (B, Cin, Cout, K, stride, T) — first config matches hertz-dev decoder usage
    # (kernel_size = 2*stride); second exercises K not divisible by stride and
    # Cin not a multiple of the bf16 sublane packing.
    configs = [
        (2, 16, 8, 4, 2, 32),
        (2, 8, 16, 7, 3, 20),
    ]

    for (B, Cin, Cout, K, S, T) in configs:
        k1, k2, k3, key = jax.random.split(key, 4)
        x = jax.random.normal(k1, (B, Cin, T), jnp.float32)
        w = jax.random.normal(k2, (Cin, Cout, K), jnp.float32) / math.sqrt(Cin * K)
        b = 0.1 * jax.random.normal(k3, (Cout,), jnp.float32)

        P = math.ceil(K / S) - 1
        Tout = (T + P - 1) * S + K - 2 * S
        expected_shape = (B, Cout, Tout)

        y_ref = jax.block_until_ready(
            causal_conv_transpose1d_ref(x, w, b, stride=S))

        # --- float32 path (v5e-safe) ------------------------------------------
        y32 = jax.block_until_ready(
            causal_conv_transpose1d(x, w, b, stride=S,
                                    compute_dtype=jnp.float32))
        assert y32.shape == expected_shape, (y32.shape, expected_shape)
        assert bool(jnp.all(jnp.isfinite(y32)))
        err32 = float(jnp.max(jnp.abs(y32 - y_ref)))
        if err32 > 2.5e-2:
            raise AssertionError(
                f"f32 kernel mismatch (cfg K={K}, S={S}): max abs err {err32}")

        # --- float32 path, batch_tile=1 (exercises grid>1 / parallel axis) ----
        y32b = jax.block_until_ready(
            causal_conv_transpose1d(x, w, b, stride=S,
                                    compute_dtype=jnp.float32, batch_tile=1))
        err32b = float(jnp.max(jnp.abs(y32b - y_ref)))
        if err32b > 2.5e-2:
            raise AssertionError(
                f"f32/bt1 kernel mismatch (cfg K={K}, S={S}): max abs err {err32b}")

        # --- bf16 end-to-end path (v6e / v7x): bf16 x, bf16 operands, bf16 out -
        ybf = jax.block_until_ready(
            causal_conv_transpose1d(x.astype(jnp.bfloat16), w, b, stride=S,
                                    compute_dtype=jnp.bfloat16,
                                    out_dtype=jnp.bfloat16))
        assert ybf.shape == expected_shape, (ybf.shape, expected_shape)
        errbf = float(jnp.max(jnp.abs(ybf.astype(jnp.float32) - y_ref)))
        if errbf > 1e-1:
            raise AssertionError(
                f"bf16 kernel mismatch (cfg K={K}, S={S}): max abs err {errbf}")

    print("KERNEL_OK")
</pallas_src>

<mosaic_0001>
module attributes {stable_mosaic.version = 11 : i64} {
  func.func @_causal_deconv_kernel(%arg0: i32, %arg1: memref<2x16x32xf32, #tpu.memory_space<vmem>>, %arg2: memref<16x40xf32, #tpu.memory_space<vmem>>, %arg3: memref<256x256xf32, #tpu.memory_space<vmem>>, %arg4: memref<2x8x256xf32, #tpu.memory_space<vmem>>, %arg5: memref<2x16x256xf32, #tpu.memory_space<vmem>>, %arg6: memref<40x256xf32, #tpu.memory_space<vmem>>) attributes {dimension_semantics = [#tpu.dimension_semantics<parallel>], iteration_bounds = array<i64: 1>, scalar_prefetch = 0 : i64, scratch_operands = 2 : i64, tpu.core_type = #tpu.core_type<tc>, window_params = [{transform_indices = @transform_0, window_bounds = array<i64: 2, 16, 32>}, {pipeline_mode = #tpu.pipeline_mode<synchronous>, transform_indices = @transform_1, window_bounds = array<i64: 16, 40>}, {pipeline_mode = #tpu.pipeline_mode<synchronous>, transform_indices = @transform_2, window_bounds = array<i64: 256, 256>}, {transform_indices = @transform_3, window_bounds = array<i64: 2, 8, 256>}]} {
    %c0 = arith.constant 0 : index
    %c0_0 = arith.constant 0 : index
    %c0_1 = arith.constant 0 : index
    %0 = vector.load %arg1[%c0, %c0_0, %c0_1] : memref<2x16x32xf32, #tpu.memory_space<vmem>>, vector<1x16x32xf32>
    %1 = vector.shape_cast %0 : vector<1x16x32xf32> to vector<16x32xf32>
    %cst = arith.constant 0.000000e+00 : f32
    %2 = vector.broadcast %cst : f32 to vector<16x127xf32>
    %c0_2 = arith.constant 0 : index
    %c0_3 = arith.constant 0 : index
    %c0_4 = arith.constant 0 : index
    %3 = vector.load %arg5[%c0_2, %c0_3, %c0_4] : memref<2x16x256xf32, #tpu.memory_space<vmem>>, vector<1x16x127xf32>
    %4 = vector.shape_cast %3 : vector<1x16x127xf32> to vector<16x127xf32>
    %5 = vector.shape_cast %2 : vector<16x127xf32> to vector<1x16x127xf32>
    tpu.vector_store %arg5[%c0_2, %c0_3, %c0_4], %5 {strides = array<i32>} : memref<2x16x256xf32, #tpu.memory_space<vmem>>, vector<1x16x127xf32>,
    %6 = vector.extract_strided_slice %1 {offsets = [0, 0], sizes = [16, 1], strides = [1, 1]} : vector<16x32xf32> to vector<16x1xf32>
    %c0_5 = arith.constant 0 : index
    %c0_6 = arith.constant 0 : index
    %c127 = arith.constant 127 : index
    %7 = vector.load %arg5[%c0_5, %c0_6, %c127] : memref<2x16x256xf32, #tpu.memory_space<vmem>>, vector<1x16x1xf32>
    %8 = vector.shape_cast %7 : vector<1x16x1xf32> to vector<16x1xf32>
    %9 = vector.shape_cast %6 : vector<16x1xf32> to vector<1x16x1xf32>
    tpu.vector_store %arg5[%c0_5, %c0_6, %c127], %9 {strides = array<i32>} : memref<2x16x256xf32, #tpu.memory_space<vmem>>, vector<1x16x1xf32>,
    %c0_7 = arith.constant 0 : index
    %c0_8 = arith.constant 0 : index
    %c128 = arith.constant 128 : index
    %10 = vector.load %arg5[%c0_7, %c0_8, %c128] : memref<2x16x256xf32, #tpu.memory_space<vmem>>, vector<1x16x32xf32>
    %11 = vector.shape_cast %10 : vector<1x16x32xf32> to vector<16x32xf32>
    %12 = vector.shape_cast %1 : vector<16x32xf32> to vector<1x16x32xf32>
    tpu.vector_store %arg5[%c0_7, %c0_8, %c128], %12 {strides = array<i32>} : memref<2x16x256xf32, #tpu.memory_space<vmem>>, vector<1x16x32xf32>,
    %cst_9 = arith.constant 0.000000e+00 : f32
    %13 = vector.broadcast %cst_9 : f32 to vector<16x96xf32>
    %c0_10 = arith.constant 0 : index
    %c0_11 = arith.constant 0 : index
    %c160 = arith.constant 160 : index
    %14 = vector.load %arg5[%c0_10, %c0_11, %c160] : memref<2x16x256xf32, #tpu.memory_space<vmem>>, vector<1x16x96xf32>
    %15 = vector.shape_cast %14 : vector<1x16x96xf32> to vector<16x96xf32>
    %16 = vector.shape_cast %13 : vector<16x96xf32> to vector<1x16x96xf32>
    tpu.vector_store %arg5[%c0_10, %c0_11, %c160], %16 {strides = array<i32>} : memref<2x16x256xf32, #tpu.memory_space<vmem>>, vector<1x16x96xf32>,
    %c1 = arith.constant 1 : index
    %c0_12 = arith.constant 0 : index
    %c0_13 = arith.constant 0 : index
    %17 = vector.load %arg1[%c1, %c0_12, %c0_13] : memref<2x16x32xf32, #tpu.memory_space<vmem>>, vector<1x16x32xf32>
    %18 = vector.shape_cast %17 : vector<1x16x32xf32> to vector<16x32xf32>
    %cst_14 = arith.constant 0.000000e+00 : f32
    %19 = vector.broadcast %cst_14 : f32 to vector<16x127xf32>
    %c1_15 = arith.constant 1 : index
    %c0_16 = arith.constant 0 : index
    %c0_17 = arith.constant 0 : index
    %20 = vector.load %arg5[%c1_15, %c0_16, %c0_17] : memref<2x16x256xf32, #tpu.memory_space<vmem>>, vector<1x16x127xf32>
    %21 = vector.shape_cast %20 : vector<1x16x127xf32> to vector<16x127xf32>
    %22 = vector.shape_cast %19 : vector<16x127xf32> to vector<1x16x127xf32>
    tpu.vector_store %arg5[%c1_15, %c0_16, %c0_17], %22 {strides = array<i32>} : memref<2x16x256xf32, #tpu.memory_space<vmem>>, vector<1x16x127xf32>,
    %23 = vector.extract_strided_slice %18 {offsets = [0, 0], sizes = [16, 1], strides = [1, 1]} : vector<16x32xf32> to vector<16x1xf32>
    %c1_18 = arith.constant 1 : index
    %c0_19 = arith.constant 0 : index
    %c127_20 = arith.constant 127 : index
    %24 = vector.load %arg5[%c1_18, %c0_19, %c127_20] : memref<2x16x256xf32, #tpu.memory_space<vmem>>, vector<1x16x1xf32>
    %25 = vector.shape_cast %24 : vector<1x16x1xf32> to vector<16x1xf32>
    %26 = vector.shape_cast %23 : vector<16x1xf32> to vector<1x16x1xf32>
    tpu.vector_store %arg5[%c1_18, %c0_19, %c127_20], %26 {strides = array<i32>} : memref<2x16x256xf32, #tpu.memory_space<vmem>>, vector<1x16x1xf32>,
    %c1_21 = arith.constant 1 : index
    %c0_22 = arith.constant 0 : index
    %c128_23 = arith.constant 128 : index
    %27 = vector.load %arg5[%c1_21, %c0_22, %c128_23] : memref<2x16x256xf32, #tpu.memory_space<vmem>>, vector<1x16x32xf32>
    %28 = vector.shape_cast %27 : vector<1x16x32xf32> to vector<16x32xf32>
    %29 = vector.shape_cast %18 : vector<16x32xf32> to vector<1x16x32xf32>
    tpu.vector_store %arg5[%c1_21, %c0_22, %c128_23], %29 {strides = array<i32>} : memref<2x16x256xf32, #tpu.memory_space<vmem>>, vector<1x16x32xf32>,
    %cst_24 = arith.constant 0.000000e+00 : f32
    %30 = vector.broadcast %cst_24 : f32 to vector<16x96xf32>
    %c1_25 = arith.constant 1 : index
    %c0_26 = arith.constant 0 : index
    %c160_27 = arith.constant 160 : index
    %31 = vector.load %arg5[%c1_25, %c0_26, %c160_27] : memref<2x16x256xf32, #tpu.memory_space<vmem>>, vector<1x16x96xf32>
    %32 = vector.shape_cast %31 : vector<1x16x96xf32> to vector<16x96xf32>
    %33 = vector.shape_cast %30 : vector<16x96xf32> to vector<1x16x96xf32>
    tpu.vector_store %arg5[%c1_25, %c0_26, %c160_27], %33 {strides = array<i32>} : memref<2x16x256xf32, #tpu.memory_space<vmem>>, vector<1x16x96xf32>,
    %c0_28 = arith.constant 0 : index
    %c0_29 = arith.constant 0 : index
    %c128_30 = arith.constant 128 : index
    %34 = vector.load %arg5[%c0_28, %c0_29, %c128_30] : memref<2x16x256xf32, #tpu.memory_space<vmem>>, vector<1x16x128xf32>
    %35 = vector.shape_cast %34 : vector<1x16x128xf32> to vector<16x128xf32>
    %c0_31 = arith.constant 0 : index
    %c0_32 = arith.constant 0 : index
    %36 = vector.load %arg6[%c0_31, %c0_32] : memref<40x256xf32, #tpu.memory_space<vmem>>, vector<16x128xf32>
    tpu.vector_store %arg6[%c0_31, %c0_32], %35 {strides = array<i32>} : memref<40x256xf32, #tpu.memory_space<vmem>>, vector<16x128xf32>,
    %c1_33 = arith.constant 1 : index
    %c0_34 = arith.constant 0 : index
    %c128_35 = arith.constant 128 : index
    %37 = vector.load %arg5[%c1_33, %c0_34, %c128_35] : memref<2x16x256xf32, #tpu.memory_space<vmem>>, vector<1x16x128xf32>
    %38 = vector.shape_cast %37 : vector<1x16x128xf32> to vector<16x128xf32>
    %c0_36 = arith.constant 0 : index
    %c128_37 = arith.constant 128 : index
    %39 = vector.load %arg6[%c0_36, %c128_37] : memref<40x256xf32, #tpu.memory_space<vmem>>, vector<16x128xf32>
    tpu.vector_store %arg6[%c0_36, %c128_37], %38 {strides = array<i32>} : memref<40x256xf32, #tpu.memory_space<vmem>>, vector<16x128xf32>,
    %c0_38 = arith.constant 0 : index
    %c0_39 = arith.constant 0 : index
    %c127_40 = arith.constant 127 : index
    %40 = vector.load %arg5[%c0_38, %c0_39, %c127_40] : memref<2x16x256xf32, #tpu.memory_space<vmem>>, vector<1x16x128xf32>
    %41 = vector.shape_cast %40 : vector<1x16x128xf32> to vector<16x128xf32>
    %c16 = arith.constant 16 : index
    %c0_41 = arith.constant 0 : index
    %42 = vector.load %arg6[%c16, %c0_41] : memref<40x256xf32, #tpu.memory_space<vmem>>, vector<16x128xf32>
    tpu.vector_store %arg6[%c16, %c0_41], %41 {strides = array<i32>} : memref<40x256xf32, #tpu.memory_space<vmem>>, vector<16x128xf32>,
    %c1_42 = arith.constant 1 : index
    %c0_43 = arith.constant 0 : index
    %c127_44 = arith.constant 127 : index
    %43 = vector.load %arg5[%c1_42, %c0_43, %c127_44] : memref<2x16x256xf32, #tpu.memory_space<vmem>>, vector<1x16x128xf32>
    %44 = vector.shape_cast %43 : vector<1x16x128xf32> to vector<16x128xf32>
    %c16_45 = arith.constant 16 : index
    %c128_46 = arith.constant 128 : index
    %45 = vector.load %arg6[%c16_45, %c128_46] : memref<40x256xf32, #tpu.memory_space<vmem>>, vector<16x128xf32>
    tpu.vector_store %arg6[%c16_45, %c128_46], %44 {strides = array<i32>} : memref<40x256xf32, #tpu.memory_space<vmem>>, vector<16x128xf32>,
    %46 = tpu.iota {dimensions = array<i32: 0>} : vector<8x256xi32>
    %c0_i32 = arith.constant 0 : i32
    %47 = vector.broadcast %c0_i32 : i32 to vector<8x256xi32>
    %48 = arith.cmpi eq, %46, %47 : vector<8x256xi32>
    %49 = arith.extui %48 : vector<8x256xi1> to vector<8x256xi32>
    %50 = arith.sitofp %49 : vector<8x256xi32> to vector<8x256xf32>
    %c32 = arith.constant 32 : index
    %c0_47 = arith.constant 0 : index
    %51 = vector.load %arg6[%c32, %c0_47] : memref<40x256xf32, #tpu.memory_space<vmem>>, vector<8x256xf32>
    tpu.vector_store %arg6[%c32, %c0_47], %50 {strides = array<i32>} : memref<40x256xf32, #tpu.memory_space<vmem>>, vector<8x256xf32>,
    %c0_48 = arith.constant 0 : index
    %c0_49 = arith.constant 0 : index
    %52 = vector.load %arg2[%c0_48, %c0_49] : memref<16x40xf32, #tpu.memory_space<vmem>>, vector<16x40xf32>
    %c0_50 = arith.constant 0 : index
    %c0_51 = arith.constant 0 : index
    %53 = vector.load %arg6[%c0_50, %c0_51] : memref<40x256xf32, #tpu.memory_space<vmem>>, vector<40x256xf32>
    %cst_52 = arith.constant dense<0.000000e+00> : vector<16x256xf32>
    %54 = tpu.matmul %52, %53, %cst_52 {dimension_numbers = #tpu.dot_dimension_numbers<[1], [0], [0], [1], [0, 0, 1, 1], [], []>} : vector<16x40xf32>, vector<40x256xf32>, vector<16x256xf32> -> vector<16x256xf32>
    %55 = vector.extract_strided_slice %54 {offsets = [0, 0], sizes = [8, 128], strides = [1, 1]} : vector<16x256xf32> to vector<8x128xf32>
    %c0_53 = arith.constant 0 : index
    %c0_54 = arith.constant 0 : index
    %56 = vector.load %arg3[%c0_53, %c0_54] : memref<256x256xf32, #tpu.memory_space<vmem>>, vector<128x256xf32>
    %cst_55 = arith.constant dense<0.000000e+00> : vector<8x256xf32>
    %57 = tpu.matmul %55, %56, %cst_55 {dimension_numbers = #tpu.dot_dimension_numbers<[1], [0], [0], [1], [0, 0, 1, 1], [], []>} : vector<8x128xf32>, vector<128x256xf32>, vector<8x256xf32> -> vector<8x256xf32>
    %58 = vector.extract_strided_slice %54 {offsets = [8, 0], sizes = [8, 128], strides = [1, 1]} : vector<16x256xf32> to vector<8x128xf32>
    %c128_56 = arith.constant 128 : index
    %c0_57 = arith.constant 0 : index
    %59 = vector.load %arg3[%c128_56, %c0_57] : memref<256x256xf32, #tpu.memory_space<vmem>>, vector<128x256xf32>
    %cst_58 = arith.constant dense<0.000000e+00> : vector<8x256xf32>
    %60 = tpu.matmul %58, %59, %cst_58 {dimension_numbers = #tpu.dot_dimension_numbers<[1], [0], [0], [1], [0, 0, 1, 1], [], []>} : vector<8x128xf32>, vector<128x256xf32>, vector<8x256xf32> -> vector<8x256xf32>
    %61 = arith.addf %57, %60 : vector<8x256xf32>
    %c0_59 = arith.constant 0 : index
    %c0_60 = arith.constant 0 : index
    %c0_61 = arith.constant 0 : index
    %62 = vector.load %arg4[%c0_59, %c0_60, %c0_61] : memref<2x8x256xf32, #tpu.memory_space<vmem>>, vector<1x8x256xf32>
    %63 = vector.shape_cast %62 : vector<1x8x256xf32> to vector<8x256xf32>
    %64 = vector.shape_cast %61 : vector<8x256xf32> to vector<1x8x256xf32>
    tpu.vector_store %arg4[%c0_59, %c0_60, %c0_61], %64 {strides = array<i32>} : memref<2x8x256xf32, #tpu.memory_space<vmem>>, vector<1x8x256xf32>,
    %65 = vector.extract_strided_slice %54 {offsets = [0, 128], sizes = [8, 128], strides = [1, 1]} : vector<16x256xf32> to vector<8x128xf32>
    %c0_62 = arith.constant 0 : index
    %c0_63 = arith.constant 0 : index
    %66 = vector.load %arg3[%c0_62, %c0_63] : memref<256x256xf32, #tpu.memory_space<vmem>>, vector<128x256xf32>
    %cst_64 = arith.constant dense<0.000000e+00> : vector<8x256xf32>
    %67 = tpu.matmul %65, %66, %cst_64 {dimension_numbers = #tpu.dot_dimension_numbers<[1], [0], [0], [1], [0, 0, 1, 1], [], []>} : vector<8x128xf32>, vector<128x256xf32>, vector<8x256xf32> -> vector<8x256xf32>
    %68 = vector.extract_strided_slice %54 {offsets = [8, 128], sizes = [8, 128], strides = [1, 1]} : vector<16x256xf32> to vector<8x128xf32>
    %c128_65 = arith.constant 128 : index
    %c0_66 = arith.constant 0 : index
    %69 = vector.load %arg3[%c128_65, %c0_66] : memref<256x256xf32, #tpu.memory_space<vmem>>, vector<128x256xf32>
    %cst_67 = arith.constant dense<0.000000e+00> : vector<8x256xf32>
    %70 = tpu.matmul %68, %69, %cst_67 {dimension_numbers = #tpu.dot_dimension_numbers<[1], [0], [0], [1], [0, 0, 1, 1], [], []>} : vector<8x128xf32>, vector<128x256xf32>, vector<8x256xf32> -> vector<8x256xf32>
    %71 = arith.addf %67, %70 : vector<8x256xf32>
    %c1_68 = arith.constant 1 : index
    %c0_69 = arith.constant 0 : index
    %c0_70 = arith.constant 0 : index
    %72 = vector.load %arg4[%c1_68, %c0_69, %c0_70] : memref<2x8x256xf32, #tpu.memory_space<vmem>>, vector<1x8x256xf32>
    %73 = vector.shape_cast %72 : vector<1x8x256xf32> to vector<8x256xf32>
    %74 = vector.shape_cast %71 : vector<8x256xf32> to vector<1x8x256xf32>
    tpu.vector_store %arg4[%c1_68, %c0_69, %c0_70], %74 {strides = array<i32>} : memref<2x8x256xf32, #tpu.memory_space<vmem>>, vector<1x8x256xf32>,
    return
  }
  func.func @transform_0(%arg0: i32) -> (i32, i32, i32) {
    %c0_i32 = arith.constant 0 : i32
    %c0_i32_0 = arith.constant 0 : i32
    %c0_i32_1 = arith.constant 0 : i32
    return %arg0, %c0_i32, %c0_i32_0 : i32, i32, i32
  }
  func.func @transform_1(%arg0: i32) -> (i32, i32) {
    %c0_i32 = arith.constant 0 : i32
    %c0_i32_0 = arith.constant 0 : i32
    %c0_i32_1 = arith.constant 0 : i32
    return %c0_i32, %c0_i32_0 : i32, i32
  }
  func.func @transform_2(%arg0: i32) -> (i32, i32) {
    %c0_i32 = arith.constant 0 : i32
    %c0_i32_0 = arith.constant 0 : i32
    %c0_i32_1 = arith.constant 0 : i32
    return %c0_i32, %c0_i32_0 : i32, i32
  }
  func.func @transform_3(%arg0: i32) -> (i32, i32, i32) {
    %c0_i32 = arith.constant 0 : i32
    %c0_i32_0 = arith.constant 0 : i32
    %c0_i32_1 = arith.constant 0 : i32
    return %arg0, %c0_i32, %c0_i32_0 : i32, i32, i32
  }
}

</mosaic_0001>

<llo_original>
// kernel: tpu_custom_call.1
$region0: #{tpu_custom_call.1}
  #allocation0 [shape = 'u32[]', space=smem, size = 0x4, offset = 0x4, fixed_abs, tag = 'smem constant byte address 0x4 - core index']
  #allocation1 [shape = 'u32[144,128]{1,0:T(1,128)}', space=vmem, size = 0x12000, scoped, tag = 'internal scratch']
  #allocation2 [shape = 'f32[2,16,256]{2,1,0:T(8,128)}', space=vmem, size = 0x8000, scoped, tag = 'scratch operand']
  #allocation3 [shape = 'f32[40,256]{1,0:T(8,128)}', space=vmem, size = 0xa000, scoped, tag = 'scratch operand']
  %s0 = inlined_call_operand.hbm [shape: f32[2,16,32], index: 0, kind: input, shape index: {}]
  %s1 = inlined_call_operand.hbm [shape: f32[16,40], index: 1, kind: input, shape index: {}]
  %s2 = inlined_call_operand.hbm [shape: f32[256,256], index: 2, kind: input, shape index: {}]
  %s3 = inlined_call_operand.hbm [shape: f32[2,8,256], index: 3, kind: output, shape index: {}]
  %s4 = sld [smem:[#allocation0]]
  $region34: #{tpu_custom_call.1} parent=0
    _
  %s6 = ssub.s32 1, %s4
  %s7 = scalar_select 0, %s6, %s4
  $region1: #{tpu_custom_call.1} parent=0
    #allocation4 [shape = 'u8[16384]{0}', space=vmem, size = 0x4000, scoped, tag = 'input window, operand 0, single buffered']
    #allocation5 [shape = 's32[1]{0}', space=sflag, size = 0x4, scoped, tag = 'scoped memory for tpu_custom_call.1']
    #allocation6 [shape = 's32[1]{0}', space=sflag, size = 0x4, scoped, tag = 'scoped memory for tpu_custom_call.1']
    #allocation7 [shape = 'u8[8192]{0}', space=vmem, size = 0x2000, scoped, tag = 'input window, operand 1, single buffered']
    #allocation8 [shape = 's32[1]{0}', space=sflag, size = 0x4, scoped, tag = 'scoped memory for tpu_custom_call.1']
    #allocation9 [shape = 'u8[262144]{0}', space=vmem, size = 0x40000, scoped, tag = 'input window, operand 2, single buffered']
    #allocation10 [shape = 'u8[16384]{0}', space=vmem, size = 0x4000, scoped, tag = 'output window, operand 0, single buffered']
    %8 = vsyncpa [#allocation5], 0
    %9 = vsyncpa [#allocation8], 0
    %10 = vsyncpa [#allocation6], 0
    // Predicated region
    $region2: #{tpu_custom_call.1} parent=1 // pred_check
      _
    $region3: #{tpu_custom_call.1} parent=1 // pred_check_branch
      %12 = sbr.rel (0) target = $region5
    $region4: #{tpu_custom_call.1} parent=1 // pred_region
      %s14 = ssub.s32 512, 512
      %15 = vsyncadd [#allocation5], %s14
      %s16 = sshll.u32 [#allocation4], 4
      %s17 = int_to_ptr.vmem [resolvable:$true] %s16
      %22 = dma.hbm_to_vmem [thread:$0]  %s0, 512, %s17, [#allocation5], 128, 128, 8
    $region5: #{tpu_custom_call.1} parent=1 // pred_fallthru
      _
    // Predicated region
    $region6: #{tpu_custom_call.1} parent=1 // pred_check
      _
    $region7: #{tpu_custom_call.1} parent=1 // pred_check_branch
      %24 = sbr.rel (0) target = $region9
    $region8: #{tpu_custom_call.1} parent=1 // pred_region
      %s26 = ssub.s32 256, 256
      %27 = vsyncadd [#allocation8], %s26
      %s28 = sshll.u32 [#allocation7], 4
      %s29 = int_to_ptr.vmem [resolvable:$true] %s28
      %34 = dma.hbm_to_vmem [thread:$0]  %s1, 256, %s29, [#allocation8], 128, 128, 8
    $region9: #{tpu_custom_call.1} parent=1 // pred_fallthru
      _
    // Predicated region
    $region10: #{tpu_custom_call.1} parent=1 // pred_check
      _
    $region11: #{tpu_custom_call.1} parent=1 // pred_check_branch
      %36 = sbr.rel (0) target = $region13
    $region12: #{tpu_custom_call.1} parent=1 // pred_region
      %s38 = ssub.s32 8192, 8192
      %39 = vsyncadd [#allocation8], %s38
      %s40 = sshll.u32 [#allocation9], 4
      %s41 = int_to_ptr.vmem [resolvable:$true] %s40
      %46 = dma.hbm_to_vmem [thread:$0]  %s2, 8192, %s41, [#allocation8], 256, 256, 16
    $region13: #{tpu_custom_call.1} parent=1 // pred_fallthru
      _
    // Predicated region
    $region14: #{tpu_custom_call.1} parent=1 // pred_check
      _
    $region15: #{tpu_custom_call.1} parent=1 // pred_check_branch
      %48 = sbr.rel (0) target = $region17
    $region16: #{tpu_custom_call.1} parent=1 // pred_region
      %49 = dma.done [#allocation5], 512
    $region17: #{tpu_custom_call.1} parent=1 // pred_fallthru
      _
    // Predicated region
    $region18: #{tpu_custom_call.1} parent=1 // pred_check
      _
    $region19: #{tpu_custom_call.1} parent=1 // pred_check_branch
      %51 = sbr.rel (0) target = $region21
    $region20: #{tpu_custom_call.1} parent=1 // pred_region
      %52 = dma.done [#allocation8], 256
    $region21: #{tpu_custom_call.1} parent=1 // pred_fallthru
      _
    // Predicated region
    $region22: #{tpu_custom_call.1} parent=1 // pred_check
      _
    $region23: #{tpu_custom_call.1} parent=1 // pred_check_branch
      %54 = sbr.rel (0) target = $region25
    $region24: #{tpu_custom_call.1} parent=1 // pred_region
      %55 = dma.done [#allocation8], 8192
    $region25: #{tpu_custom_call.1} parent=1 // pred_fallthru
      _
    %v56 = vld [vmem:[#allocation4] sm:$0xff]
    %v57 = vld [vmem:[#allocation4 + $0x8] sm:$0xff]
    %vm58 = vcmask 1039360
    %59 = vst.msk [vmem:[#allocation2] sm:$0xff] %vm58, 0.0
    %60 = vst.msk [vmem:[#allocation2 + $0x10] sm:$0xff] %vm58, 0.0
    %63 = vrot.lane.b32.xlu0 %v56, 127
    %v64 = vpop.permute.xlu0 %63
    %65 = vrot.lane.b32.xlu0 %v57, 127
    %v66 = vpop.permute.xlu0 %65
    %vm69 = vcmask 1048568
    %70 = vst.msk [vmem:[#allocation2] sm:$0xff] %vm69, %v64
    %71 = vst.msk [vmem:[#allocation2 + $0x10] sm:$0xff] %vm69, %v66
    %vm72 = vcmask 261120
    %73 = vst.msk [vmem:[#allocation2 + $0x8] sm:$0xff] %vm72, %v56
    %74 = vst.msk [vmem:[#allocation2 + $0x18] sm:$0xff] %vm72, %v57
    %vm75 = vcmask 1047808
    %76 = vst.msk [vmem:[#allocation2 + $0x8] sm:$0xff] %vm75, 0.0
    %77 = vst.msk [vmem:[#allocation2 + $0x18] sm:$0xff] %vm75, 0.0
    %s78 = scalar_lea.vmem [#allocation4], 16
    %v79 = vld [vmem:[%s78] sm:$0xff]
    %v80 = vld [vmem:[%s78 + $0x8] sm:$0xff]
    %s81 = scalar_lea.vmem [#allocation2], 32
    %82 = vst.msk [vmem:[%s81] sm:$0xff] %vm58, 0.0
    %83 = vst.msk [vmem:[%s81 + $0x10] sm:$0xff] %vm58, 0.0
    %86 = vrot.lane.b32.xlu0 %v79, 127
    %v87 = vpop.permute.xlu0 %86
    %88 = vrot.lane.b32.xlu0 %v80, 127
    %v89 = vpop.permute.xlu0 %88
    %92 = vst.msk [vmem:[%s81] sm:$0xff] %vm69, %v87
    %93 = vst.msk [vmem:[%s81 + $0x10] sm:$0xff] %vm69, %v89
    %94 = vst.msk [vmem:[%s81 + $0x8] sm:$0xff] %vm72, %v79
    %95 = vst.msk [vmem:[%s81 + $0x18] sm:$0xff] %vm72, %v80
    %96 = vst.msk [vmem:[%s81 + $0x8] sm:$0xff] %vm75, 0.0
    %97 = vst.msk [vmem:[%s81 + $0x18] sm:$0xff] %vm75, 0.0
    %v98 = vld [vmem:[#allocation2 + $0x8] sm:$0xff]
    %v99 = vld [vmem:[#allocation2 + $0x18] sm:$0xff]
    %100 = vst [vmem:[#allocation3] sm:$0xff] %v98
    %101 = vst [vmem:[#allocation3 + $0x10] sm:$0xff] %v99
    %v102 = vld [vmem:[%s81 + $0x8] sm:$0xff]
    %v103 = vld [vmem:[%s81 + $0x18] sm:$0xff]
    %104 = vst [vmem:[#allocation3 + $0x8] sm:$0xff] %v102
    %105 = vst [vmem:[#allocation3 + $0x18] sm:$0xff] %v103
    %v106 = vld [vmem:[#allocation2] sm:$0xff]
    %v107 = vld [vmem:[#allocation2 + $0x8] sm:$0xff]
    %v108 = vld [vmem:[#allocation2 + $0x10] sm:$0xff]
    %v109 = vld [vmem:[#allocation2 + $0x18] sm:$0xff]
    %114 = vrot.lane.b32.xlu0 %v106, 1
    %v115 = vpop.permute.xlu0 %114
    %116 = vrot.lane.b32.xlu0 %v107, 1
    %v117 = vpop.permute.xlu0 %116
    %118 = vrot.lane.b32.xlu0 %v108, 1
    %v119 = vpop.permute.xlu0 %118
    %120 = vrot.lane.b32.xlu0 %v109, 1
    %v121 = vpop.permute.xlu0 %120
    %vm122 = vcmask 7168
    %v123 = vsel %vm122, %v115, %v117
    %v124 = vsel %vm122, %v119, %v121
    %127 = vst [vmem:[#allocation3 + $0x20] sm:$0xff] %v123
    %128 = vst [vmem:[#allocation3 + $0x30] sm:$0xff] %v124
    %v129 = vld [vmem:[%s81] sm:$0xff]
    %v130 = vld [vmem:[%s81 + $0x8] sm:$0xff]
    %v131 = vld [vmem:[%s81 + $0x10] sm:$0xff]
    %v132 = vld [vmem:[%s81 + $0x18] sm:$0xff]
    %137 = vrot.lane.b32.xlu0 %v129, 1
    %v138 = vpop.permute.xlu0 %137
    %139 = vrot.lane.b32.xlu0 %v130, 1
    %v140 = vpop.permute.xlu0 %139
    %141 = vrot.lane.b32.xlu0 %v131, 1
    %v142 = vpop.permute.xlu0 %141
    %143 = vrot.lane.b32.xlu0 %v132, 1
    %v144 = vpop.permute.xlu0 %143
    %v145 = vsel %vm122, %v138, %v140
    %v146 = vsel %vm122, %v142, %v144
    %149 = vst [vmem:[#allocation3 + $0x28] sm:$0xff] %v145
    %150 = vst [vmem:[#allocation3 + $0x38] sm:$0xff] %v146
    %v151 = vlaneseq
    %v152 = vshrl.u32 %v151, 7
    %vm153 = vcmp.eq.s32.totalorder %v152, 0
    %v154 = vsel %vm153, 1, 0
    %v155 = vcvt.s32.f32 %v154
    %156 = vst [vmem:[#allocation3 + $0x40] sm:$0xff] %v155
    %157 = vst [vmem:[#allocation3 + $0x48] sm:$0xff] %v155
    %v158 = vld [vmem:[#allocation7] sm:$0xff]
    %v159 = vld [vmem:[#allocation7 + $0x8] sm:$0xff]
    %v160 = vld [vmem:[#allocation3] sm:$0xff]
    %v161 = vld [vmem:[#allocation3 + $0x8] sm:$0xff]
    %v162 = vld [vmem:[#allocation3 + $0x10] sm:$0xff]
    %v163 = vld [vmem:[#allocation3 + $0x18] sm:$0xff]
    %v164 = vld [vmem:[#allocation3 + $0x20] sm:$0xff]
    %v165 = vld [vmem:[#allocation3 + $0x28] sm:$0xff]
    %v166 = vld [vmem:[#allocation3 + $0x30] sm:$0xff]
    %v167 = vld [vmem:[#allocation3 + $0x38] sm:$0xff]
    %v168 = vld [vmem:[#allocation3 + $0x40] sm:$0xff]
    %v169 = vld [vmem:[#allocation3 + $0x48] sm:$0xff]
    %vm170 = vcmask 326656
    %v172 = vsel %vm170, %v158, 0
    %v175 = vsel %vm170, %v159, 0
    %177 = vmatprep.subr.mxu0 %v161
    %178 = vmatpush1.msra.mxu0 %v160
    %179 = vmatprep.subr.mxu0 %v163
    %180 = vmatpush1.msra.mxu0 %v162
    %181 = vmatprep.subr.mxu0 %v165
    %182 = vmatpush1.msra.mxu0 %v164
    %183 = vmatprep.subr.mxu0 %v167
    %184 = vmatpush1.msra.mxu0 %v166
    %185 = vmatprep.subr.mxu0 %v169
    %186 = vmatpush1.msra.mxu0 %v168
    %187 = vmatprep.subr.mxu0 0.0
    %188 = vmatpush1.msra.mxu0 0.0
    %189 = vmatprep.subr.mxu0 0.0
    %190 = vmatpush1.msra.mxu0 0.0
    %191 = vmatprep.subr.mxu0 0.0
    %192 = vmatpush1.msra.mxu0 0.0
    %193 = vmatprep.subr.mxu0 0.0
    %194 = vmatpush1.msra.mxu0 0.0
    %195 = vmatprep.subr.mxu0 0.0
    %196 = vmatpush1.msra.mxu0 0.0
    %197 = vmatprep.subr.mxu0 0.0
    %198 = vmatpush1.msra.mxu0 0.0
    %199 = vmatprep.subr.mxu0 0.0
    %200 = vmatpush1.msra.mxu0 0.0
    %201 = vmatprep.subr.mxu0 0.0
    %202 = vmatpush1.msra.mxu0 0.0
    %203 = vmatprep.subr.mxu0 0.0
    %204 = vmatpush1.msra.mxu0 0.0
    %205 = vmatprep.subr.mxu0 0.0
    %206 = vmatpush1.msra.mxu0 0.0
    %207 = vmatprep.subr.mxu0 0.0
    %208 = vmatpush1.msra.mxu0 0.0
    %209 = vmatprep.subr.mxu0 0.0
    %210 = vmatpush1.msra.mxu0 0.0
    %211 = vmatprep.subr.mxu0 0.0
    %212 = vmatpush1.msra.mxu0 0.0
    %213 = vmatprep.subr.mxu0 0.0
    %214 = vmatpush1.msra.mxu0 0.0
    %215 = vmatprep.subr.mxu0 0.0
    %216 = vmatpush1.msra.mxu0 0.0
    %217 = vmatprep.subr.mxu0 0.0
    %218 = vmatpush1.msra.mxu0 0.0
    %219 = vmatprep.subr.mxu0 0.0
    %220 = vmatpush1.msra.mxu0 0.0
    %221 = vmatprep.subr.mxu0 0.0
    %222 = vmatpush1.msra.mxu0 0.0
    %223 = vmatprep.subr.mxu0 0.0
    %224 = vmatpush1.msra.mxu0 0.0
    %225 = vmatprep.subr.mxu0 0.0
    %226 = vmatpush1.msra.mxu0 0.0
    %227 = vmatprep.subr.mxu0 0.0
    %228 = vmatpush1.msra.mxu0 0.0
    %229 = vmatprep.subr.mxu0 0.0
    %230 = vmatpush1.msra.mxu0 0.0
    %231 = vmatprep.subr.mxu0 0.0
    %232 = vmatpush1.msra.mxu0 0.0
    %233 = vmatprep.subr.mxu0 0.0
    %234 = vmatpush1.msra.mxu0 0.0
    %235 = vmatprep.subr.mxu0 0.0
    %236 = vmatpush1.msra.mxu0 0.0
    %237 = vmatprep.subr.mxu0 0.0
    %238 = vmatpush1.msra.mxu0 0.0
    %239 = vmatprep.subr.mxu0 0.0
    %240 = vmatpush1.msra.mxu0 0.0
    %241 = vmatprep.mubr.f32.mxu0 0.0
    %242 = vmatmul.mubr.f32.gmra.mrb[0].mxu0 %v172
    %v243 = vpop.f32.mrb[0].mxu0
    %v244 = vadd.f32 0.0, %v243
    %v245 = vpop.f32.mrb[0].mxu0
    %v246 = vadd.f32 0.0, %v245
    %247 = vmatprep.mubr.f32.mxu0 0.0
    %248 = vmatmul.mubr.f32.gmra.mrb[0].mxu0 %v175
    %v249 = vpop.f32.mrb[0].mxu0
    %v250 = vadd.f32 0.0, %v249
    %v251 = vpop.f32.mrb[0].mxu0
    %v252 = vadd.f32 0.0, %v251
    %253 = vdwg.mxu0
    %v254 = vld [vmem:[#allocation9] sm:$0xff]
    %v255 = vld [vmem:[#allocation9 + $0x8] sm:$0xff]
    %v256 = vld [vmem:[#allocation9 + $0x10] sm:$0xff]
    %v257 = vld [vmem:[#allocation9 + $0x18] sm:$0xff]
    %v258 = vld [vmem:[#allocation9 + $0x20] sm:$0xff]
    %v259 = vld [vmem:[#allocation9 + $0x28] sm:$0xff]
    %v260 = vld [vmem:[#allocation9 + $0x30] sm:$0xff]
    %v261 = vld [vmem:[#allocation9 + $0x38] sm:$0xff]
    %v262 = vld [vmem:[#allocation9 + $0x40] sm:$0xff]
    %v263 = vld [vmem:[#allocation9 + $0x48] sm:$0xff]
    %v264 = vld [vmem:[#allocation9 + $0x50] sm:$0xff]
    %v265 = vld [vmem:[#allocation9 + $0x58] sm:$0xff]
    %v266 = vld [vmem:[#allocation9 + $0x60] sm:$0xff]
    %v267 = vld [vmem:[#allocation9 + $0x68] sm:$0xff]
    %v268 = vld [vmem:[#allocation9 + $0x70] sm:$0xff]
    %v269 = vld [vmem:[#allocation9 + $0x78] sm:$0xff]
    %v270 = vld [vmem:[#allocation9 + $0x80] sm:$0xff]
    %v271 = vld [vmem:[#allocation9 + $0x88] sm:$0xff]
    %v272 = vld [vmem:[#allocation9 + $0x90] sm:$0xff]
    %v273 = vld [vmem:[#allocation9 + $0x98] sm:$0xff]
    %v274 = vld [vmem:[#allocation9 + $0xa0] sm:$0xff]
    %v275 = vld [vmem:[#allocation9 + $0xa8] sm:$0xff]
    %v276 = vld [vmem:[#allocation9 + $0xb0] sm:$0xff]
    %v277 = vld [vmem:[#allocation9 + $0xb8] sm:$0xff]
    %v278 = vld [vmem:[#allocation9 + $0xc0] sm:$0xff]
    %v279 = vld [vmem:[#allocation9 + $0xc8] sm:$0xff]
    %v280 = vld [vmem:[#allocation9 + $0xd0] sm:$0xff]
    %v281 = vld [vmem:[#allocation9 + $0xd8] sm:$0xff]
    %v282 = vld [vmem:[#allocation9 + $0xe0] sm:$0xff]
    %v283 = vld [vmem:[#allocation9 + $0xe8] sm:$0xff]
    %v284 = vld [vmem:[#allocation9 + $0xf0] sm:$0xff]
    %v285 = vld [vmem:[#allocation9 + $0xf8] sm:$0xff]
    %v286 = vld [vmem:[#allocation9 + $0x100] sm:$0xff]
    %v287 = vld [vmem:[#allocation9 + $0x108] sm:$0xff]
    %v288 = vld [vmem:[#allocation9 + $0x110] sm:$0xff]
    %v289 = vld [vmem:[#allocation9 + $0x118] sm:$0xff]
    %v290 = vld [vmem:[#allocation9 + $0x120] sm:$0xff]
    %v291 = vld [vmem:[#allocation9 + $0x128] sm:$0xff]
    %v292 = vld [vmem:[#allocation9 + $0x130] sm:$0xff]
    %v293 = vld [vmem:[#allocation9 + $0x138] sm:$0xff]
    %v294 = vld [vmem:[#allocation9 + $0x140] sm:$0xff]
    %v295 = vld [vmem:[#allocation9 + $0x148] sm:$0xff]
    %v296 = vld [vmem:[#allocation9 + $0x150] sm:$0xff]
    %v297 = vld [vmem:[#allocation9 + $0x158] sm:$0xff]
    %v298 = vld [vmem:[#allocation9 + $0x160] sm:$0xff]
    %v299 = vld [vmem:[#allocation9 + $0x168] sm:$0xff]
    %v300 = vld [vmem:[#allocation9 + $0x170] sm:$0xff]
    %v301 = vld [vmem:[#allocation9 + $0x178] sm:$0xff]
    %v302 = vld [vmem:[#allocation9 + $0x180] sm:$0xff]
    %v303 = vld [vmem:[#allocation9 + $0x188] sm:$0xff]
    %v304 = vld [vmem:[#allocation9 + $0x190] sm:$0xff]
    %v305 = vld [vmem:[#allocation9 + $0x198] sm:$0xff]
    %v306 = vld [vmem:[#allocation9 + $0x1a0] sm:$0xff]
    %v307 = vld [vmem:[#allocation9 + $0x1a8] sm:$0xff]
    %v308 = vld [vmem:[#allocation9 + $0x1b0] sm:$0xff]
    %v309 = vld [vmem:[#allocation9 + $0x1b8] sm:$0xff]
    %v310 = vld [vmem:[#allocation9 + $0x1c0] sm:$0xff]
    %v311 = vld [vmem:[#allocation9 + $0x1c8] sm:$0xff]
    %v312 = vld [vmem:[#allocation9 + $0x1d0] sm:$0xff]
    %v313 = vld [vmem:[#allocation9 + $0x1d8] sm:$0xff]
    %v314 = vld [vmem:[#allocation9 + $0x1e0] sm:$0xff]
    %v315 = vld [vmem:[#allocation9 + $0x1e8] sm:$0xff]
    %v316 = vld [vmem:[#allocation9 + $0x1f0] sm:$0xff]
    %v317 = vld [vmem:[#allocation9 + $0x1f8] sm:$0xff]
    %318 = vmatprep.subr.mxu0 %v287
    %319 = vmatpush1.msra.mxu0 %v286
    %320 = vmatprep.subr.mxu0 %v289
    %321 = vmatpush1.msra.mxu0 %v288
    %322 = vmatprep.subr.mxu0 %v291
    %323 = vmatpush1.msra.mxu0 %v290
    %324 = vmatprep.subr.mxu0 %v293
    %325 = vmatpush1.msra.mxu0 %v292
    %326 = vmatprep.subr.mxu0 %v295
    %327 = vmatpush1.msra.mxu0 %v294
    %328 = vmatprep.subr.mxu0 %v297
    %329 = vmatpush1.msra.mxu0 %v296
    %330 = vmatprep.subr.mxu0 %v299
    %331 = vmatpush1.msra.mxu0 %v298
    %332 = vmatprep.subr.mxu0 %v301
    %333 = vmatpush1.msra.mxu0 %v300
    %334 = vmatprep.subr.mxu0 %v303
    %335 = vmatpush1.msra.mxu0 %v302
    %336 = vmatprep.subr.mxu0 %v305
    %337 = vmatpush1.msra.mxu0 %v304
    %338 = vmatprep.subr.mxu0 %v307
    %339 = vmatpush1.msra.mxu0 %v306
    %340 = vmatprep.subr.mxu0 %v309
    %341 = vmatpush1.msra.mxu0 %v308
    %342 = vmatprep.subr.mxu0 %v311
    %343 = vmatpush1.msra.mxu0 %v310
    %344 = vmatprep.subr.mxu0 %v313
    %345 = vmatpush1.msra.mxu0 %v312
    %346 = vmatprep.subr.mxu0 %v315
    %347 = vmatpush1.msra.mxu0 %v314
    %348 = vmatprep.subr.mxu0 %v317
    %349 = vmatpush1.msra.mxu0 %v316
    %350 = vmatprep.subr.mxu0 0.0
    %351 = vmatpush1.msra.mxu0 0.0
    %352 = vmatprep.subr.mxu0 0.0
    %353 = vmatpush1.msra.mxu0 0.0
    %354 = vmatprep.subr.mxu0 0.0
    %355 = vmatpush1.msra.mxu0 0.0
    %356 = vmatprep.subr.mxu0 0.0
    %357 = vmatpush1.msra.mxu0 0.0
    %358 = vmatprep.subr.mxu0 0.0
    %359 = vmatpush1.msra.mxu0 0.0
    %360 = vmatprep.subr.mxu0 0.0
    %361 = vmatpush1.msra.mxu0 0.0
    %362 = vmatprep.subr.mxu0 0.0
    %363 = vmatpush1.msra.mxu0 0.0
    %364 = vmatprep.subr.mxu0 0.0
    %365 = vmatpush1.msra.mxu0 0.0
    %366 = vmatprep.subr.mxu0 0.0
    %367 = vmatpush1.msra.mxu0 0.0
    %368 = vmatprep.subr.mxu0 0.0
    %369 = vmatpush1.msra.mxu0 0.0
    %370 = vmatprep.subr.mxu0 0.0
    %371 = vmatpush1.msra.mxu0 0.0
    %372 = vmatprep.subr.mxu0 0.0
    %373 = vmatpush1.msra.mxu0 0.0
    %374 = vmatprep.subr.mxu0 0.0
    %375 = vmatpush1.msra.mxu0 0.0
    %376 = vmatprep.subr.mxu0 0.0
    %377 = vmatpush1.msra.mxu0 0.0
    %378 = vmatprep.subr.mxu0 0.0
    %379 = vmatpush1.msra.mxu0 0.0
    %380 = vmatprep.subr.mxu0 0.0
    %381 = vmatpush1.msra.mxu0 0.0
    %382 = vmatprep.mubr.f32.mxu0 0.0
    %383 = vmatmul.mubr.f32.gmra.mrb[0].mxu0 %v250
    %v384 = vpop.f32.mrb[0].mxu0
    %v385 = vadd.f32 0.0, %v384
    %v386 = vpop.f32.mrb[0].mxu0
    %v387 = vadd.f32 0.0, %v386
    %388 = vdwg.mxu0
    %389 = vmatprep.subr.mxu0 %v255
    %390 = vmatpush1.msra.mxu0 %v254
    %391 = vmatprep.subr.mxu0 %v257
    %392 = vmatpush1.msra.mxu0 %v256
    %393 = vmatprep.subr.mxu0 %v259
    %394 = vmatpush1.msra.mxu0 %v258
    %395 = vmatprep.subr.mxu0 %v261
    %396 = vmatpush1.msra.mxu0 %v260
    %397 = vmatprep.subr.mxu0 %v263
    %398 = vmatpush1.msra.mxu0 %v262
    %399 = vmatprep.subr.mxu0 %v265
    %400 = vmatpush1.msra.mxu0 %v264
    %401 = vmatprep.subr.mxu0 %v267
    %402 = vmatpush1.msra.mxu0 %v266
    %403 = vmatprep.subr.mxu0 %v269
    %404 = vmatpush1.msra.mxu0 %v268
    %405 = vmatprep.subr.mxu0 %v271
    %406 = vmatpush1.msra.mxu0 %v270
    %407 = vmatprep.subr.mxu0 %v273
    %408 = vmatpush1.msra.mxu0 %v272
    %409 = vmatprep.subr.mxu0 %v275
    %410 = vmatpush1.msra.mxu0 %v274
    %411 = vmatprep.subr.mxu0 %v277
    %412 = vmatpush1.msra.mxu0 %v276
    %413 = vmatprep.subr.mxu0 %v279
    %414 = vmatpush1.msra.mxu0 %v278
    %415 = vmatprep.subr.mxu0 %v281
    %416 = vmatpush1.msra.mxu0 %v280
    %417 = vmatprep.subr.mxu0 %v283
    %418 = vmatpush1.msra.mxu0 %v282
    %419 = vmatprep.subr.mxu0 %v285
    %420 = vmatpush1.msra.mxu0 %v284
    %421 = vmatprep.subr.mxu0 0.0
    %422 = vmatpush1.msra.mxu0 0.0
    %423 = vmatprep.subr.mxu0 0.0
    %424 = vmatpush1.msra.mxu0 0.0
    %425 = vmatprep.subr.mxu0 0.0
    %426 = vmatpush1.msra.mxu0 0.0
    %427 = vmatprep.subr.mxu0 0.0
    %428 = vmatpush1.msra.mxu0 0.0
    %429 = vmatprep.subr.mxu0 0.0
    %430 = vmatpush1.msra.mxu0 0.0
    %431 = vmatprep.subr.mxu0 0.0
    %432 = vmatpush1.msra.mxu0 0.0
    %433 = vmatprep.subr.mxu0 0.0
    %434 = vmatpush1.msra.mxu0 0.0
    %435 = vmatprep.subr.mxu0 0.0
    %436 = vmatpush1.msra.mxu0 0.0
    %437 = vmatprep.subr.mxu0 0.0
    %438 = vmatpush1.msra.mxu0 0.0
    %439 = vmatprep.subr.mxu0 0.0
    %440 = vmatpush1.msra.mxu0 0.0
    %441 = vmatprep.subr.mxu0 0.0
    %442 = vmatpush1.msra.mxu0 0.0
    %443 = vmatprep.subr.mxu0 0.0
    %444 = vmatpush1.msra.mxu0 0.0
    %445 = vmatprep.subr.mxu0 0.0
    %446 = vmatpush1.msra.mxu0 0.0
    %447 = vmatprep.subr.mxu0 0.0
    %448 = vmatpush1.msra.mxu0 0.0
    %449 = vmatprep.subr.mxu0 0.0
    %450 = vmatpush1.msra.mxu0 0.0
    %451 = vmatprep.subr.mxu0 0.0
    %452 = vmatpush1.msra.mxu0 0.0
    %453 = vmatprep.mubr.f32.mxu0 0.0
    %454 = vmatmul.mubr.f32.gmra.mrb[0].mxu0 %v244
    %v455 = vpop.f32.mrb[0].mxu0
    %v456 = vadd.f32 %v385, %v455
    %v457 = vpop.f32.mrb[0].mxu0
    %v458 = vadd.f32 %v387, %v457
    %459 = vdwg.mxu0
    %460 = vst [vmem:[#allocation10] sm:$0xff] %v456
    %461 = vst [vmem:[#allocation10 + $0x8] sm:$0xff] %v458
    %v462 = vld [vmem:[#allocation9] sm:$0xff]
    %v463 = vld [vmem:[#allocation9 + $0x8] sm:$0xff]
    %v464 = vld [vmem:[#allocation9 + $0x10] sm:$0xff]
    %v465 = vld [vmem:[#allocation9 + $0x18] sm:$0xff]
    %v466 = vld [vmem:[#allocation9 + $0x20] sm:$0xff]
    %v467 = vld [vmem:[#allocation9 + $0x28] sm:$0xff]
    %v468 = vld [vmem:[#allocation9 + $0x30] sm:$0xff]
    %v469 = vld [vmem:[#allocation9 + $0x38] sm:$0xff]
    %v470 = vld [vmem:[#allocation9 + $0x40] sm:$0xff]
    %v471 = vld [vmem:[#allocation9 + $0x48] sm:$0xff]
    %v472 = vld [vmem:[#allocation9 + $0x50] sm:$0xff]
    %v473 = vld [vmem:[#allocation9 + $0x58] sm:$0xff]
    %v474 = vld [vmem:[#allocation9 + $0x60] sm:$0xff]
    %v475 = vld [vmem:[#allocation9 + $0x68] sm:$0xff]
    %v476 = vld [vmem:[#allocation9 + $0x70] sm:$0xff]
    %v477 = vld [vmem:[#allocation9 + $0x78] sm:$0xff]
    %v478 = vld [vmem:[#allocation9 + $0x80] sm:$0xff]
    %v479 = vld [vmem:[#allocation9 + $0x88] sm:$0xff]
    %v480 = vld [vmem:[#allocation9 + $0x90] sm:$0xff]
    %v481 = vld [vmem:[#allocation9 + $0x98] sm:$0xff]
    %v482 = vld [vmem:[#allocation9 + $0xa0] sm:$0xff]
    %v483 = vld [vmem:[#allocation9 + $0xa8] sm:$0xff]
    %v484 = vld [vmem:[#allocation9 + $0xb0] sm:$0xff]
    %v485 = vld [vmem:[#allocation9 + $0xb8] sm:$0xff]
    %v486 = vld [vmem:[#allocation9 + $0xc0] sm:$0xff]
    %v487 = vld [vmem:[#allocation9 + $0xc8] sm:$0xff]
    %v488 = vld [vmem:[#allocation9 + $0xd0] sm:$0xff]
    %v489 = vld [vmem:[#allocation9 + $0xd8] sm:$0xff]
    %v490 = vld [vmem:[#allocation9 + $0xe0] sm:$0xff]
    %v491 = vld [vmem:[#allocation9 + $0xe8] sm:$0xff]
    %v492 = vld [vmem:[#allocation9 + $0xf0] sm:$0xff]
    %v493 = vld [vmem:[#allocation9 + $0xf8] sm:$0xff]
    %v494 = vld [vmem:[#allocation9 + $0x100] sm:$0xff]
    %v495 = vld [vmem:[#allocation9 + $0x108] sm:$0xff]
    %v496 = vld [vmem:[#allocation9 + $0x110] sm:$0xff]
    %v497 = vld [vmem:[#allocation9 + $0x118] sm:$0xff]
    %v498 = vld [vmem:[#allocation9 + $0x120] sm:$0xff]
    %v499 = vld [vmem:[#allocation9 + $0x128] sm:$0xff]
    %v500 = vld [vmem:[#allocation9 + $0x130] sm:$0xff]
    %v501 = vld [vmem:[#allocation9 + $0x138] sm:$0xff]
    %v502 = vld [vmem:[#allocation9 + $0x140] sm:$0xff]
    %v503 = vld [vmem:[#allocation9 + $0x148] sm:$0xff]
    %v504 = vld [vmem:[#allocation9 + $0x150] sm:$0xff]
    %v505 = vld [vmem:[#allocation9 + $0x158] sm:$0xff]
    %v506 = vld [vmem:[#allocation9 + $0x160] sm:$0xff]
    %v507 = vld [vmem:[#allocation9 + $0x168] sm:$0xff]
    %v508 = vld [vmem:[#allocation9 + $0x170] sm:$0xff]
    %v509 = vld [vmem:[#allocation9 + $0x178] sm:$0xff]
    %v510 = vld [vmem:[#allocation9 + $0x180] sm:$0xff]
    %v511 = vld [vmem:[#allocation9 + $0x188] sm:$0xff]
    %v512 = vld [vmem:[#allocation9 + $0x190] sm:$0xff]
    %v513 = vld [vmem:[#allocation9 + $0x198] sm:$0xff]
    %v514 = vld [vmem:[#allocation9 + $0x1a0] sm:$0xff]
    %v515 = vld [vmem:[#allocation9 + $0x1a8] sm:$0xff]
    %v516 = vld [vmem:[#allocation9 + $0x1b0] sm:$0xff]
    %v517 = vld [vmem:[#allocation9 + $0x1b8] sm:$0xff]
    %v518 = vld [vmem:[#allocation9 + $0x1c0] sm:$0xff]
    %v519 = vld [vmem:[#allocation9 + $0x1c8] sm:$0xff]
    %v520 = vld [vmem:[#allocation9 + $0x1d0] sm:$0xff]
    %v521 = vld [vmem:[#allocation9 + $0x1d8] sm:$0xff]
    %v522 = vld [vmem:[#allocation9 + $0x1e0] sm:$0xff]
    %v523 = vld [vmem:[#allocation9 + $0x1e8] sm:$0xff]
    %v524 = vld [vmem:[#allocation9 + $0x1f0] sm:$0xff]
    %v525 = vld [vmem:[#allocation9 + $0x1f8] sm:$0xff]
    %526 = vmatprep.subr.mxu0 %v495
    %527 = vmatpush1.msra.mxu0 %v494
    %528 = vmatprep.subr.mxu0 %v497
    %529 = vmatpush1.msra.mxu0 %v496
    %530 = vmatprep.subr.mxu0 %v499
    %531 = vmatpush1.msra.mxu0 %v498
    %532 = vmatprep.subr.mxu0 %v501
    %533 = vmatpush1.msra.mxu0 %v500
    %534 = vmatprep.subr.mxu0 %v503
    %535 = vmatpush1.msra.mxu0 %v502
    %536 = vmatprep.subr.mxu0 %v505
    %537 = vmatpush1.msra.mxu0 %v504
    %538 = vmatprep.subr.mxu0 %v507
    %539 = vmatpush1.msra.mxu0 %v506
    %540 = vmatprep.subr.mxu0 %v509
    %541 = vmatpush1.msra.mxu0 %v508
    %542 = vmatprep.subr.mxu0 %v511
    %543 = vmatpush1.msra.mxu0 %v510
    %544 = vmatprep.subr.mxu0 %v513
    %545 = vmatpush1.msra.mxu0 %v512
    %546 = vmatprep.subr.mxu0 %v515
    %547 = vmatpush1.msra.mxu0 %v514
    %548 = vmatprep.subr.mxu0 %v517
    %549 = vmatpush1.msra.mxu0 %v516
    %550 = vmatprep.subr.mxu0 %v519
    %551 = vmatpush1.msra.mxu0 %v518
    %552 = vmatprep.subr.mxu0 %v521
    %553 = vmatpush1.msra.mxu0 %v520
    %554 = vmatprep.subr.mxu0 %v523
    %555 = vmatpush1.msra.mxu0 %v522
    %556 = vmatprep.subr.mxu0 %v525
    %557 = vmatpush1.msra.mxu0 %v524
    %558 = vmatprep.subr.mxu0 0.0
    %559 = vmatpush1.msra.mxu0 0.0
    %560 = vmatprep.subr.mxu0 0.0
    %561 = vmatpush1.msra.mxu0 0.0
    %562 = vmatprep.subr.mxu0 0.0
    %563 = vmatpush1.msra.mxu0 0.0
    %564 = vmatprep.subr.mxu0 0.0
    %565 = vmatpush1.msra.mxu0 0.0
    %566 = vmatprep.subr.mxu0 0.0
    %567 = vmatpush1.msra.mxu0 0.0
    %568 = vmatprep.subr.mxu0 0.0
    %569 = vmatpush1.msra.mxu0 0.0
    %570 = vmatprep.subr.mxu0 0.0
    %571 = vmatpush1.msra.mxu0 0.0
    %572 = vmatprep.subr.mxu0 0.0
    %573 = vmatpush1.msra.mxu0 0.0
    %574 = vmatprep.subr.mxu0 0.0
    %575 = vmatpush1.msra.mxu0 0.0
    %576 = vmatprep.subr.mxu0 0.0
    %577 = vmatpush1.msra.mxu0 0.0
    %578 = vmatprep.subr.mxu0 0.0
    %579 = vmatpush1.msra.mxu0 0.0
    %580 = vmatprep.subr.mxu0 0.0
    %581 = vmatpush1.msra.mxu0 0.0
    %582 = vmatprep.subr.mxu0 0.0
    %583 = vmatpush1.msra.mxu0 0.0
    %584 = vmatprep.subr.mxu0 0.0
    %585 = vmatpush1.msra.mxu0 0.0
    %586 = vmatprep.subr.mxu0 0.0
    %587 = vmatpush1.msra.mxu0 0.0
    %588 = vmatprep.subr.mxu0 0.0
    %589 = vmatpush1.msra.mxu0 0.0
    %590 = vmatprep.mubr.f32.mxu0 0.0
    %591 = vmatmul.mubr.f32.gmra.mrb[0].mxu0 %v252
    %v592 = vpop.f32.mrb[0].mxu0
    %v593 = vadd.f32 0.0, %v592
    %v594 = vpop.f32.mrb[0].mxu0
    %v595 = vadd.f32 0.0, %v594
    %596 = vdwg.mxu0
    %597 = vmatprep.subr.mxu0 %v463
    %598 = vmatpush1.msra.mxu0 %v462
    %599 = vmatprep.subr.mxu0 %v465
    %600 = vmatpush1.msra.mxu0 %v464
    %601 = vmatprep.subr.mxu0 %v467
    %602 = vmatpush1.msra.mxu0 %v466
    %603 = vmatprep.subr.mxu0 %v469
    %604 = vmatpush1.msra.mxu0 %v468
    %605 = vmatprep.subr.mxu0 %v471
    %606 = vmatpush1.msra.mxu0 %v470
    %607 = vmatprep.subr.mxu0 %v473
    %608 = vmatpush1.msra.mxu0 %v472
    %609 = vmatprep.subr.mxu0 %v475
    %610 = vmatpush1.msra.mxu0 %v474
    %611 = vmatprep.subr.mxu0 %v477
    %612 = vmatpush1.msra.mxu0 %v476
    %613 = vmatprep.subr.mxu0 %v479
    %614 = vmatpush1.msra.mxu0 %v478
    %615 = vmatprep.subr.mxu0 %v481
    %616 = vmatpush1.msra.mxu0 %v480
    %617 = vmatprep.subr.mxu0 %v483
    %618 = vmatpush1.msra.mxu0 %v482
    %619 = vmatprep.subr.mxu0 %v485
    %620 = vmatpush1.msra.mxu0 %v484
    %621 = vmatprep.subr.mxu0 %v487
    %622 = vmatpush1.msra.mxu0 %v486
    %623 = vmatprep.subr.mxu0 %v489
    %624 = vmatpush1.msra.mxu0 %v488
    %625 = vmatprep.subr.mxu0 %v491
    %626 = vmatpush1.msra.mxu0 %v490
    %627 = vmatprep.subr.mxu0 %v493
    %628 = vmatpush1.msra.mxu0 %v492
    %629 = vmatprep.subr.mxu0 0.0
    %630 = vmatpush1.msra.mxu0 0.0
    %631 = vmatprep.subr.mxu0 0.0
    %632 = vmatpush1.msra.mxu0 0.0
    %633 = vmatprep.subr.mxu0 0.0
    %634 = vmatpush1.msra.mxu0 0.0
    %635 = vmatprep.subr.mxu0 0.0
    %636 = vmatpush1.msra.mxu0 0.0
    %637 = vmatprep.subr.mxu0 0.0
    %638 = vmatpush1.msra.mxu0 0.0
    %639 = vmatprep.subr.mxu0 0.0
    %640 = vmatpush1.msra.mxu0 0.0
    %641 = vmatprep.subr.mxu0 0.0
    %642 = vmatpush1.msra.mxu0 0.0
    %643 = vmatprep.subr.mxu0 0.0
    %644 = vmatpush1.msra.mxu0 0.0
    %645 = vmatprep.subr.mxu0 0.0
    %646 = vmatpush1.msra.mxu0 0.0
    %647 = vmatprep.subr.mxu0 0.0
    %648 = vmatpush1.msra.mxu0 0.0
    %649 = vmatprep.subr.mxu0 0.0
    %650 = vmatpush1.msra.mxu0 0.0
    %651 = vmatprep.subr.mxu0 0.0
    %652 = vmatpush1.msra.mxu0 0.0
    %653 = vmatprep.subr.mxu0 0.0
    %654 = vmatpush1.msra.mxu0 0.0
    %655 = vmatprep.subr.mxu0 0.0
    %656 = vmatpush1.msra.mxu0 0.0
    %657 = vmatprep.subr.mxu0 0.0
    %658 = vmatpush1.msra.mxu0 0.0
    %659 = vmatprep.subr.mxu0 0.0
    %660 = vmatpush1.msra.mxu0 0.0
    %661 = vmatprep.mubr.f32.mxu0 0.0
    %662 = vmatmul.mubr.f32.gmra.mrb[0].mxu0 %v246
    %v663 = vpop.f32.mrb[0].mxu0
    %v664 = vadd.f32 %v593, %v663
    %v665 = vpop.f32.mrb[0].mxu0
    %v666 = vadd.f32 %v595, %v665
    %667 = vdwg.mxu0
    %s668 = scalar_lea.vmem [#allocation10], 16
    %669 = vst [vmem:[%s668] sm:$0xff] %v664
    %670 = vst [vmem:[%s668 + $0x8] sm:$0xff] %v666
    // Predicated region
    $region26: #{tpu_custom_call.1} parent=1 // pred_check
      _
    $region27: #{tpu_custom_call.1} parent=1 // pred_check_branch
      %672 = sbr.rel (0) target = $region29
    $region28: #{tpu_custom_call.1} parent=1 // pred_region
      %s674 = ssub.s32 512, 512
      %675 = vsyncadd [#allocation6], %s674
      %s676 = sshll.u32 [#allocation10], 4
      %s677 = int_to_ptr.vmem [resolvable:$true] %s676
      %682 = dma.vmem_to_hbm [thread:$0]  %s677, 512, %s3, [#allocation6], 256, 256, 16
    $region29: #{tpu_custom_call.1} parent=1 // pred_fallthru
      _
    // Predicated region
    $region30: #{tpu_custom_call.1} parent=1 // pred_check
      _
    $region31: #{tpu_custom_call.1} parent=1 // pred_check_branch
      %684 = sbr.rel (0) target = $region33
    $region32: #{tpu_custom_call.1} parent=1 // pred_region
      %685 = dma.done [#allocation6], 512
    $region33: #{tpu_custom_call.1} parent=1 // pred_fallthru
      _
    %686 = vsyncpa [#allocation5], 1
    %687 = vsyncpa [#allocation8], 1
    %688 = vsyncpa [#allocation6], 1

</llo_original>
